<compile_context>
chip_gen: v5e
topology: v5e:2x2
jax: 0.10.0
libtpu: 0.0.40
codegen_flags: <defaults>
</compile_context>

<pallas_src>
import jax
import jax.numpy as jnp
from jax.experimental import pallas as pl
from jax.experimental.pallas import tpu as pltpu

_LANES = 128
_MAX_TILE_ROWS = 4096      # 4096 * 128 * 4 B = 2 MiB f32 block; in+out double
                           # buffered = 8 MiB, safe on v5e/v6e/v7x defaults.
_SUBLANE_ALIGN = 32        # covers f32(8) / bf16(16) / int8-fp8(32) sublanes


def _round_up(a, b):
    return -(-a // b) * b


def _mish_kernel(x_ref, o_ref):
    x = x_ref[...].astype(jnp.float32)       # compute in f32 (free: mem-bound)
    # tanh(softplus(x)) = (e*(e+2)) / (e*(e+2) + 2) with e = exp(x).
    # Clamp the exp argument so e*(e+2) never overflows f32; for x > 20 the
    # true tanh(softplus(x)) == 1 to f32 precision, so we return x there.
    e = jnp.exp(jnp.minimum(x, 20.0))
    num = e * (e + 2.0)
    den = num + 2.0
    r = pl.reciprocal(den, approx=True)       # EUP vrcp (cheap slot)
    r = r * (2.0 - den * r)                   # one Newton step on VPU (free)
    y = jnp.where(x > 20.0, x, x * (num * r))
    o_ref[...] = y.astype(o_ref.dtype)


def mish_pallas(x):
    orig_shape = x.shape
    orig_dtype = x.dtype
    n = x.size
    if n == 0:
        return x

    itemsize = jnp.dtype(orig_dtype).itemsize

    # ---- lay out as a lane-dense (rows, 128) slab -------------------------
    rem = n % _LANES
    if rem == 0:
        # fast path: pure reshape, no extra HBM pass
        x2d = x.reshape(-1, _LANES)
        ragged = False
    else:
        # ragged path: pad only up to the next multiple of 128 lanes
        pad = _LANES - rem
        x2d = jnp.pad(x.reshape(-1), (0, pad)).reshape(-1, _LANES)
        ragged = True
    rows = x2d.shape[0]

    # ---- tile selection ----------------------------------------------------
    # Big blocks; aim for >= 2 grid steps (v7x has 2 TensorCores) when the
    # input is large enough, and keep tile_rows a multiple of 32.
    tile_rows = min(_MAX_TILE_ROWS, _round_up(pl.cdiv(rows, 2), _SUBLANE_ALIGN))
    if tile_rows >= rows:
        tile_rows = rows                     # single block == full array dims
    grid = (pl.cdiv(rows, tile_rows),)       # partial last block is fine

    cost = pl.CostEstimate(
        flops=8 * n,
        transcendentals=2 * n,               # exp + approx reciprocal
        bytes_accessed=2 * n * itemsize,
    )

    out2d = pl.pallas_call(
        _mish_kernel,
        out_shape=jax.ShapeDtypeStruct((rows, _LANES), orig_dtype),
        grid_spec=pltpu.PrefetchScalarGridSpec(
            num_scalar_prefetch=0,
            grid=grid,
            in_specs=[pl.BlockSpec((tile_rows, _LANES), lambda i: (i, 0))],
            out_specs=pl.BlockSpec((tile_rows, _LANES), lambda i: (i, 0)),
        ),
        compiler_params=pltpu.CompilerParams(
            dimension_semantics=("parallel",)),
        cost_estimate=cost,
    )(x2d)

    if ragged:
        return out2d.reshape(-1)[:n].reshape(orig_shape)
    return out2d.reshape(orig_shape)


if __name__ == "__main__":
    key = jax.random.PRNGKey(0)
    x = jax.random.normal(key, (2, 4, 16, 16), dtype=jnp.float32)  # NCHW

    y = mish_pallas(x)
    jax.block_until_ready(y)

    # reference check against plain-JAX mish
    y_ref = x * jnp.tanh(jax.nn.softplus(x))
    assert y.shape == x.shape and y.dtype == x.dtype
    assert jnp.max(jnp.abs(y - y_ref)) < 1e-4

    # also exercise a ragged (non-128-multiple) size through the slow path
    x2 = jax.random.normal(jax.random.PRNGKey(1), (3, 5, 7), dtype=jnp.float32)
    y2 = mish_pallas(x2)
    jax.block_until_ready(y2)
    y2_ref = x2 * jnp.tanh(jax.nn.softplus(x2))
    assert jnp.max(jnp.abs(y2 - y2_ref)) < 1e-4

    print("KERNEL_OK")
</pallas_src>

<mosaic_0001>
module attributes {stable_mosaic.version = 11 : i64} {
  func.func @_mish_kernel(%arg0: i32, %arg1: memref<16x128xf32, #tpu.memory_space<vmem>>, %arg2: memref<16x128xf32, #tpu.memory_space<vmem>>) attributes {dimension_semantics = [#tpu.dimension_semantics<parallel>], iteration_bounds = array<i64: 1>, scalar_prefetch = 0 : i64, scratch_operands = 0 : i64, tpu.core_type = #tpu.core_type<tc>, window_params = [{transform_indices = @transform_0, window_bounds = array<i64: 16, 128>}, {transform_indices = @transform_1, window_bounds = array<i64: 16, 128>}]} {
    %c0 = arith.constant 0 : index
    %c0_0 = arith.constant 0 : index
    %0 = vector.load %arg1[%c0, %c0_0] : memref<16x128xf32, #tpu.memory_space<vmem>>, vector<16x128xf32>
    %cst = arith.constant 2.000000e+01 : f32
    %1 = vector.broadcast %cst : f32 to vector<16x128xf32>
    %2 = arith.minimumf %0, %1 : vector<16x128xf32>
    %3 = math.exp %2 : vector<16x128xf32>
    %cst_1 = arith.constant 2.000000e+00 : f32
    %4 = vector.broadcast %cst_1 : f32 to vector<16x128xf32>
    %5 = arith.addf %3, %4 : vector<16x128xf32>
    %6 = arith.mulf %3, %5 : vector<16x128xf32>
    %cst_2 = arith.constant 2.000000e+00 : f32
    %7 = vector.broadcast %cst_2 : f32 to vector<16x128xf32>
    %8 = arith.addf %6, %7 : vector<16x128xf32>
    %9 = tpu.reciprocal %8 {approx = true} : vector<16x128xf32> -> vector<16x128xf32>
    %10 = arith.mulf %8, %9 : vector<16x128xf32>
    %cst_3 = arith.constant 2.000000e+00 : f32
    %11 = vector.broadcast %cst_3 : f32 to vector<16x128xf32>
    %12 = arith.subf %11, %10 : vector<16x128xf32>
    %13 = arith.mulf %9, %12 : vector<16x128xf32>
    %cst_4 = arith.constant 2.000000e+01 : f32
    %14 = vector.broadcast %cst_4 : f32 to vector<16x128xf32>
    %15 = arith.cmpf ogt, %0, %14 : vector<16x128xf32>
    %16 = arith.mulf %6, %13 : vector<16x128xf32>
    %17 = arith.mulf %0, %16 : vector<16x128xf32>
    %18 = arith.select %15, %0, %17 : vector<16x128xi1>, vector<16x128xf32>
    %c0_5 = arith.constant 0 : index
    %c0_6 = arith.constant 0 : index
    %19 = vector.load %arg2[%c0_5, %c0_6] : memref<16x128xf32, #tpu.memory_space<vmem>>, vector<16x128xf32>
    tpu.vector_store %arg2[%c0_5, %c0_6], %18 {strides = array<i32>} : memref<16x128xf32, #tpu.memory_space<vmem>>, vector<16x128xf32>,
    return
  }
  func.func @transform_0(%arg0: i32) -> (i32, i32) {
    %c0_i32 = arith.constant 0 : i32
    %c0_i32_0 = arith.constant 0 : i32
    return %arg0, %c0_i32 : i32, i32
  }
  func.func @transform_1(%arg0: i32) -> (i32, i32) {
    %c0_i32 = arith.constant 0 : i32
    %c0_i32_0 = arith.constant 0 : i32
    return %arg0, %c0_i32 : i32, i32
  }
}

</mosaic_0001>

<llo_original>
// kernel: tpu_custom_call.1
$region0: #{tpu_custom_call.1}
  #allocation0 [shape = 'u32[]', space=smem, size = 0x4, offset = 0x4, fixed_abs, tag = 'smem constant byte address 0x4 - core index']
  #allocation1 [shape = 'u32[72,128]{1,0:T(1,128)}', space=vmem, size = 0x9000, scoped, tag = 'internal scratch']
  %s0 = inlined_call_operand.hbm [shape: f32[16,128], index: 0, kind: input, shape index: {}]
  %s1 = inlined_call_operand.hbm [shape: f32[16,128], index: 1, kind: output, shape index: {}]
  %s2 = sld [smem:[#allocation0]]
  $region18: #{tpu_custom_call.1} parent=0
    _
  %s4 = ssub.s32 1, %s2
  %s5 = scalar_select 0, %s4, %s2
  $region1: #{tpu_custom_call.1} parent=0
    #allocation2 [shape = 'u8[8192]{0}', space=vmem, size = 0x2000, scoped, tag = 'input window, operand 0, single buffered']
    #allocation3 [shape = 's32[1]{0}', space=sflag, size = 0x4, scoped, tag = 'scoped memory for tpu_custom_call.1']
    #allocation4 [shape = 's32[1]{0}', space=sflag, size = 0x4, scoped, tag = 'scoped memory for tpu_custom_call.1']
    #allocation5 [shape = 'u8[8192]{0}', space=vmem, size = 0x2000, scoped, tag = 'output window, operand 0, single buffered']
    %6 = vsyncpa [#allocation3], 0
    %7 = vsyncpa [#allocation4], 0
    // Predicated region
    $region2: #{tpu_custom_call.1} parent=1 // pred_check
      _
    $region3: #{tpu_custom_call.1} parent=1 // pred_check_branch
      %9 = sbr.rel (0) target = $region5
    $region4: #{tpu_custom_call.1} parent=1 // pred_region
      %11 = vsyncadd [#allocation3], 0
      %s12 = sshll.u32 %s0, 4
      %s13 = int_to_ptr.hbm [resolvable:$true] %s12
      %s14 = sshll.u32 [#allocation2], 4
      %s15 = int_to_ptr.vmem [resolvable:$true] %s14
      %20 = dma.hbm_to_vmem [thread:$0]  %s13, 256, %s15, [#allocation3], 128, 128, 8
    $region5: #{tpu_custom_call.1} parent=1 // pred_fallthru
      _
    // Predicated region
    $region6: #{tpu_custom_call.1} parent=1 // pred_check
      _
    $region7: #{tpu_custom_call.1} parent=1 // pred_check_branch
      %22 = sbr.rel (0) target = $region9
    $region8: #{tpu_custom_call.1} parent=1 // pred_region
      %24 = dma.done [#allocation3], 256
    $region9: #{tpu_custom_call.1} parent=1 // pred_fallthru
      _
    %v25 = vld [vmem:[#allocation2] sm:$0xff]
    %v26 = vld [vmem:[#allocation2 + $0x8] sm:$0xff]
    %v27 = vmin.f32 %v25, 20.0
    %v28 = vmin.f32 %v26, 20.0
    %v29 = vmul.f32 %v27, 1.442695
    %v30 = vpow.pop %v29
    %v31 = vmul.f32 %v28, 1.442695
    %v32 = vpow.pop %v31
    %v33 = vadd.f32 %v30, 2.0
    %v34 = vadd.f32 %v32, 2.0
    %v35 = vmul.f32 %v30, %v33
    %v36 = vmul.f32 %v32, %v34
    %v37 = vadd.f32 %v35, 2.0
    %v38 = vadd.f32 %v36, 2.0
    %v39 = vrcp.pop %v37
    %v40 = vrcp.pop %v38
    %v41 = vmul.f32 %v37, %v39
    %v42 = vmul.f32 %v38, %v40
    %v43 = vsub.f32 2.0, %v41
    %v44 = vsub.f32 2.0, %v42
    %v45 = vmul.f32 %v39, %v43
    %v46 = vmul.f32 %v40, %v44
    %vm47 = vcmp.gt.f32.partialorder %v25, 20.0
    %vm48 = vcmp.gt.f32.partialorder %v26, 20.0
    %v49 = vmul.f32 %v35, %v45
    %v50 = vmul.f32 %v36, %v46
    %v51 = vmul.f32 %v25, %v49
    %v52 = vmul.f32 %v26, %v50
    %v53 = vsel %vm47, %v25, %v51
    %v54 = vsel %vm48, %v26, %v52
    %55 = vst [vmem:[#allocation5] sm:$0xff] %v53
    %56 = vst [vmem:[#allocation5 + $0x8] sm:$0xff] %v54
    // Predicated region
    $region10: #{tpu_custom_call.1} parent=1 // pred_check
      _
    $region11: #{tpu_custom_call.1} parent=1 // pred_check_branch
      %58 = sbr.rel (0) target = $region13
    $region12: #{tpu_custom_call.1} parent=1 // pred_region
      %60 = vsyncadd [#allocation4], 0
      %s61 = sshll.u32 [#allocation5], 4
      %s62 = int_to_ptr.vmem [resolvable:$true] %s61
      %s63 = sshll.u32 %s1, 4
      %s64 = int_to_ptr.hbm [resolvable:$true] %s63
      %69 = dma.vmem_to_hbm [thread:$0]  %s62, 256, %s64, [#allocation4], 128, 128, 8
    $region13: #{tpu_custom_call.1} parent=1 // pred_fallthru
      _
    // Predicated region
    $region14: #{tpu_custom_call.1} parent=1 // pred_check
      _
    $region15: #{tpu_custom_call.1} parent=1 // pred_check_branch
      %71 = sbr.rel (0) target = $region17
    $region16: #{tpu_custom_call.1} parent=1 // pred_region
      %73 = dma.done [#allocation4], 256
    $region17: #{tpu_custom_call.1} parent=1 // pred_fallthru
      _
    %74 = vsyncpa [#allocation3], 1
    %75 = vsyncpa [#allocation4], 1

</llo_original>
